<compile_context>
chip_gen: v7x
topology: tpu7x:2x2x1
jax: 0.10.0
libtpu: 0.0.40
codegen_flags: <defaults>
</compile_context>

<pallas_src>
import math

import jax
import jax.numpy as jnp
from jax.experimental import pallas as pl
from jax.experimental.pallas import tpu as pltpu

_LANE = 128
_SUBLANE = 8
_MAX_COLS = 8192
_SMALL_RAGGED_MAX_ELEMS = 128 * 1024  # single whole-array block cap for ragged totals


def _identity_kernel(x_ref, o_ref):
    # Pure whole-tile copy of the current VMEM block.
    o_ref[...] = x_ref[...]


def _round_up(v: int, m: int) -> int:
    return ((v + m - 1) // m) * m


def _tpu_config():
    """Return (vmem_capacity_bytes, tensorcore_count) with safe fallbacks."""
    vmem_cap = 128 * 1024 * 1024
    try:
        vmem_cap = int(pltpu.get_tpu_info().vmem_capacity_bytes)
    except Exception:
        pass
    # v7x exposes 64 MiB VMEM per TensorCore and has 2 TCs; v5e/v6e have
    # 128 MiB and a single TC.
    num_cores = 2 if vmem_cap <= 64 * 1024 * 1024 else 1
    return vmem_cap, num_cores


def _choose_cols(total: int):
    """Largest lane-dense (multiple-of-128) column count that divides `total` exactly."""
    if total < _LANE or total % _LANE != 0:
        return None
    upper = min(_MAX_COLS, total)
    for c in range(upper - (upper % _LANE), _LANE - 1, -_LANE):
        if total % c == 0:
            return c
    return _LANE  # unreachable: 128 always divides a multiple of 128


def _identity_impl(x: jax.Array) -> jax.Array:
    orig_shape = x.shape
    dtype = x.dtype
    total = math.prod(orig_shape)
    if total == 0:
        return x  # nothing to copy

    itemsize = x.dtype.itemsize
    vmem_cap, num_cores = _tpu_config()
    # Native sublane packing: 8 rows (32-bit), 16 (bf16/f16), 32 (int8/fp8).
    sub = max(_SUBLANE, (_SUBLANE * 4) // itemsize)

    flat = x.reshape(-1)
    cols = _choose_cols(total)

    if cols is None:
        # Ragged element count (not a multiple of 128).
        if total <= _SMALL_RAGGED_MAX_ELEMS:
            # Single whole-array block: no grid, no padding, no trailing slice.
            x2 = flat.reshape(1, total)
            out2 = pl.pallas_call(
                _identity_kernel,
                out_shape=jax.ShapeDtypeStruct((1, total), dtype),
                input_output_aliases={0: 0},
            )(x2)
            return out2.reshape(orig_shape)
        # TODO(synk): very large ragged totals still pay a pad + slice pass; a
        # bulk+tail two-kernel scheme would need an extra stitch pass, so keep
        # the simple padded fallback for this rare case.
        cols = 1024
        padded_total = pl.cdiv(total, cols) * cols
        flat = jnp.pad(flat, (0, padded_total - total))
    else:
        padded_total = total

    rows = padded_total // cols
    x2 = flat.reshape(rows, cols)

    # Generation-aware block sizing (2 arrays x 2 buffers of live VMEM).
    is_v7x_like = vmem_cap <= 64 * 1024 * 1024
    block_bytes = (8 if is_v7x_like else 16) * 1024 * 1024

    if rows <= sub:
        tile_r = rows  # full first dim — always a legal block extent
    else:
        tile_r = block_bytes // (cols * itemsize)
        tile_r = max(sub, min(tile_r, rows))
        tile_r = (tile_r // sub) * sub

    grid_r = pl.cdiv(rows, tile_r)

    # On 2-TensorCore chips (v7x) expose an even number of grid steps so the
    # "parallel" split gives each core the same number of blocks.
    if num_cores >= 2 and rows > sub:
        target_steps = max(2, 2 * ((grid_r + 1) // 2))
        tile_r = min(rows, max(sub, _round_up(pl.cdiv(rows, target_steps), sub)))
        grid_r = pl.cdiv(rows, tile_r)

    # Scoped VMEM sized from the actual live buffers, not a blanket constant.
    live_bytes = 2 * 2 * tile_r * cols * itemsize  # in+out, double-buffered
    vmem_limit = max(live_bytes + 8 * 1024 * 1024, 32 * 1024 * 1024)
    vmem_limit = min(vmem_limit, 40 * 1024 * 1024 if is_v7x_like else 96 * 1024 * 1024)

    out2 = pl.pallas_call(
        _identity_kernel,
        out_shape=jax.ShapeDtypeStruct((rows, cols), dtype),
        grid_spec=pltpu.PrefetchScalarGridSpec(
            num_scalar_prefetch=0,
            grid=(grid_r,),
            in_specs=[pl.BlockSpec((tile_r, cols), lambda i: (i, 0))],
            out_specs=pl.BlockSpec((tile_r, cols), lambda i: (i, 0)),
        ),
        input_output_aliases={0: 0},
        compiler_params=pltpu.CompilerParams(
            dimension_semantics=("parallel",),
            vmem_limit_bytes=vmem_limit,
        ),
    )(x2)

    out_flat = out2.reshape(-1)
    if padded_total != total:
        out_flat = out_flat[:total]
    return out_flat.reshape(orig_shape)


# Donating the argument lets XLA reuse the input HBM buffer as the aliased
# pallas output: no new allocation, no defensive copy.  The caller's handle to
# the argument is invalidated after the call (functional analog of returning x).
identity = jax.jit(_identity_impl, donate_argnums=0)


if __name__ == "__main__":
    shape = (2, 4, 16, 16)
    x = jax.random.normal(jax.random.PRNGKey(0), shape, dtype=jnp.float32)
    # The input is donated, so regenerate the (deterministic) reference for checks.
    expected = jax.random.normal(jax.random.PRNGKey(0), shape, dtype=jnp.float32)

    y = jax.block_until_ready(identity(x))

    assert y.shape == expected.shape, (y.shape, expected.shape)
    assert y.dtype == expected.dtype, (y.dtype, expected.dtype)
    assert bool(jnp.all(y == expected)), "identity output mismatch"

    # Ragged (non-multiple-of-128) element count: exercises the pad-free
    # single-block path.
    zshape = (3, 5, 7)
    z = jax.random.normal(jax.random.PRNGKey(1), zshape, dtype=jnp.float32)
    z_expected = jax.random.normal(jax.random.PRNGKey(1), zshape, dtype=jnp.float32)
    w = jax.block_until_ready(identity(z))
    assert w.shape == z_expected.shape and bool(jnp.all(w == z_expected)), (
        "ragged identity mismatch"
    )

    print("KERNEL_OK")
</pallas_src>

<mosaic_0001>
module attributes {stable_mosaic.version = 11 : i64} {
  func.func @_identity_kernel(%arg0: i32, %arg1: memref<1x2048xf32, #tpu.memory_space<vmem>>, %arg2: memref<1x2048xf32, #tpu.memory_space<vmem>>) attributes {dimension_semantics = [#tpu.dimension_semantics<parallel>], iteration_bounds = array<i64: 1>, scalar_prefetch = 0 : i64, scratch_operands = 0 : i64, tpu.core_type = #tpu.core_type<tc>, window_params = [{transform_indices = @transform_0, window_bounds = array<i64: 1, 2048>}, {transform_indices = @transform_1, window_bounds = array<i64: 1, 2048>}]} {
    %c0 = arith.constant 0 : index
    %c0_0 = arith.constant 0 : index
    %0 = vector.load %arg1[%c0, %c0_0] : memref<1x2048xf32, #tpu.memory_space<vmem>>, vector<1x2048xf32>
    %c0_1 = arith.constant 0 : index
    %c0_2 = arith.constant 0 : index
    %1 = vector.load %arg2[%c0_1, %c0_2] : memref<1x2048xf32, #tpu.memory_space<vmem>>, vector<1x2048xf32>
    tpu.vector_store %arg2[%c0_1, %c0_2], %0 {strides = array<i32>} : memref<1x2048xf32, #tpu.memory_space<vmem>>, vector<1x2048xf32>,
    return
  }
  func.func @transform_0(%arg0: i32) -> (i32, i32) {
    %c0_i32 = arith.constant 0 : i32
    %c0_i32_0 = arith.constant 0 : i32
    return %arg0, %c0_i32 : i32, i32
  }
  func.func @transform_1(%arg0: i32) -> (i32, i32) {
    %c0_i32 = arith.constant 0 : i32
    %c0_i32_0 = arith.constant 0 : i32
    return %arg0, %c0_i32 : i32, i32
  }
}

</mosaic_0001>

<llo_original>
// kernel: _identity_impl.1
$region0: #{_identity_impl.1}
  #allocation0 [shape = 'u32[]', space=smem, size = 0x4, offset = 0x4, fixed_abs, tag = 'smem constant byte address 0x4 - core index']
  #allocation1 [shape = 'u32[144,128]{1,0:T(1,128)}', space=vmem, size = 0x12000, scoped, tag = 'internal scratch']
  %s0 = inlined_call_operand.vmem [shape: f32[1,2048], index: 0, kind: input, shape index: {}, may-alias: {0,1}]
  %s1 = inlined_call_operand.vmem [shape: f32[1,2048], index: 1, kind: output, shape index: {}, may-alias: {0,1}]
  %s2 = sld [smem:[#allocation0]]
  $region14: #{_identity_impl.1} parent=0
    _
  %s4 = ssub.s32 1, %s2
  %s5 = scalar_select 0, %s4, %s2
  // Predicated region
  $region2: #{_identity_impl.1} parent=0 // pred_check
    _
  $region3: #{_identity_impl.1} parent=0 // pred_check_branch
    %7 = sbr.rel (0) target = $region5
  $region4: #{_identity_impl.1} parent=0 // pred_region
    _
  $region5: #{_identity_impl.1} parent=0 // pred_fallthru
    _
  %v8 = vld [vmem:[%s0] sm:$0xff]
  %v9 = vld [vmem:[%s0 + $0x8] sm:$0xff]
  %10 = vst [vmem:[%s1] sm:$0xff] %v8
  %11 = vst [vmem:[%s1 + $0x8] sm:$0xff] %v9
  // Predicated region
  $region6: #{_identity_impl.1} parent=0 // pred_check
    _
  $region7: #{_identity_impl.1} parent=0 // pred_check_branch
    %13 = sbr.rel (0) target = $region9
  $region8: #{_identity_impl.1} parent=0 // pred_region
    _
  $region9: #{_identity_impl.1} parent=0 // pred_fallthru
    _
  // Predicated region
  $region10: #{_identity_impl.1} parent=0 // pred_check
    _
  $region11: #{_identity_impl.1} parent=0 // pred_check_branch
    %15 = sbr.rel (0) target = $region13
  $region12: #{_identity_impl.1} parent=0 // pred_region
    _
  $region13: #{_identity_impl.1} parent=0 // pred_fallthru
    _

</llo_original>
